<compile_context>
chip_gen: v7x
topology: tpu7x:2x2x1
jax: 0.10.0
libtpu: 0.0.40
codegen_flags: <defaults>
</compile_context>

<pallas_src>
import functools

import jax
import jax.numpy as jnp
from jax.experimental import pallas as pl
from jax.experimental.pallas import tpu as pltpu

_LANE = 128  # partial-count output is lane-padded to 128 for unmasked stores


def _accuracy_kernel(pred_ref, tgt_ref, out_ref, *, topk, thresh, n_rows, tile_n):
    """Per-block kernel: writes partial correct counts (one row per block)."""
    i = pl.program_id(0)

    pred = pred_ref[...].astype(jnp.float32)          # (tile_n, C) f32
    tgt = tgt_ref[...]                                # (tile_n, 1) i32

    # Ragged-tile mask: rows beyond n_rows are garbage from the partial block.
    row = jax.lax.broadcasted_iota(jnp.int32, (tile_n, 1), 0)
    valid = (i * tile_n + row) < n_rows               # (tile_n, 1) bool

    # One-hot of the target class along the lane axis (iota computed once).
    col = jax.lax.broadcasted_iota(jnp.int32, pred.shape, 1)
    onehot = col == tgt                               # (tile_n, C)

    # Target-class score per row, and rank = #classes strictly greater.
    tgt_score = jnp.sum(jnp.where(onehot, pred, 0.0), axis=1, keepdims=True)
    rank = jnp.sum((pred > tgt_score).astype(jnp.int32), axis=1, keepdims=True)

    if thresh is None:
        base = valid
    else:
        base = valid & (tgt_score > jnp.float32(thresh))

    # Build a lane-dense (1, 128) int32 row of partial counts for this block.
    lane = jax.lax.broadcasted_iota(jnp.int32, (1, _LANE), 1)
    counts = jnp.zeros((1, _LANE), jnp.int32)
    for idx, k in enumerate(topk):
        c = jnp.sum((base & (rank < k)).astype(jnp.int32))
        counts = counts + jnp.where(lane == idx, c, 0)
    out_ref[...] = counts


def _pick_tile_n(n, c, itemsize):
    """Pick a row-tile so the per-block f32 working set is ~2 MiB.

    Input double-buffer + elementwise temporaries then stay well inside VMEM on
    v5e/v6e (128 MiB) and v7x (64 MiB) while keeping DMAs large.
    """
    del itemsize  # temporaries dominate and are f32-sized regardless of input dtype
    budget = 2 * 1024 * 1024
    t = budget // max(1, c * 4)
    t = (t // 8) * 8
    t = max(8, min(1024, t))
    n_up = ((n + 7) // 8) * 8
    return max(8, min(t, n_up))


def accuracy_pallas(pred, target, topk=(1,), thresh=None, tile_n=None):
    """Pallas equivalent of mmdet accuracy().

    pred:   (N, num_class) float (f32 or bf16 — kept in its own dtype on the wire)
    target: (N,) integer
    Returns a single float32 scalar if topk is an int, else a list of scalars.
    """
    assert isinstance(topk, (int, tuple))
    if isinstance(topk, int):
        topk = (topk,)
        return_single = True
    else:
        return_single = False

    assert pred.ndim == 2 and target.ndim == 1
    N, C = pred.shape
    if N == 0:
        accu = [jnp.float32(0.0) for _ in topk]
        return accu[0] if return_single else accu
    assert target.shape[0] == N

    maxk = max(topk)
    assert maxk <= C, f"maxk {maxk} exceeds pred dimension {C}"
    assert len(topk) <= _LANE

    target = target.astype(jnp.int32).reshape(N, 1)

    if tile_n is None:
        tile_n = _pick_tile_n(N, C, pred.dtype.itemsize)
    tile_n = max(8, (int(tile_n) // 8) * 8)

    num_tiles = pl.cdiv(N, tile_n)

    # VMEM budget: double-buffered pred tile + target tile + f32 temporaries.
    vmem_bytes = (2 * tile_n * C * pred.dtype.itemsize
                  + 2 * tile_n * 4
                  + 8 * tile_n * C * 4
                  + (1 << 20))
    vmem_limit = int(min(48 * 1024 * 1024, max(32 * 1024 * 1024, vmem_bytes)))

    kernel = functools.partial(
        _accuracy_kernel, topk=tuple(topk), thresh=thresh, n_rows=N, tile_n=tile_n)

    # TODO(synk): for very large num_class (tens of thousands) add an inner
    # "arbitrary" grid axis over C with carried tgt_score / partial rank.
    partial_counts = pl.pallas_call(
        kernel,
        out_shape=jax.ShapeDtypeStruct((num_tiles, _LANE), jnp.int32),
        grid_spec=pltpu.PrefetchScalarGridSpec(
            num_scalar_prefetch=0,
            grid=(num_tiles,),
            in_specs=[
                pl.BlockSpec((tile_n, C), lambda i: (i, 0)),
                pl.BlockSpec((tile_n, 1), lambda i: (i, 0)),
            ],
            out_specs=pl.BlockSpec((1, _LANE), lambda i: (i, 0)),
        ),
        compiler_params=pltpu.CompilerParams(
            dimension_semantics=("parallel",),
            vmem_limit_bytes=vmem_limit),
    )(pred, target)

    counts = jnp.sum(partial_counts, axis=0)          # (128,) int32
    res = [counts[i].astype(jnp.float32) * (100.0 / N) for i in range(len(topk))]
    return res[0] if return_single else res


class AccuracyPallas:
    """Mirror of the mmdet Accuracy nn.Module (no parameters)."""

    def __init__(self, topk=(1,), thresh=None):
        self.topk = topk
        self.thresh = thresh

    def __call__(self, pred, target):
        return accuracy_pallas(pred, target, self.topk, self.thresh)


def _reference(pred, target, topk, thresh):
    """Pure-JAX reference for sanity checking."""
    pred = pred.astype(jnp.float32)
    N = pred.shape[0]
    tgt_score = jnp.take_along_axis(pred, target[:, None].astype(jnp.int32), axis=1)
    rank = jnp.sum(pred > tgt_score, axis=1)
    base = jnp.ones((N,), bool) if thresh is None else (tgt_score[:, 0] > thresh)
    return [100.0 * jnp.sum((rank < k) & base) / N for k in topk]


if __name__ == "__main__":
    key = jax.random.PRNGKey(0)
    k1, k2 = jax.random.split(key)

    # Ragged N (not a multiple of 8) exercises the in-kernel masking path.
    N, C = 13, 32
    pred = jax.random.normal(k1, (N, C), dtype=jnp.float32)
    target = jax.random.randint(k2, (N,), 0, C, dtype=jnp.int32)

    # multi-k + thresholded config
    acc_mod = AccuracyPallas(topk=(1, 5), thresh=0.0)
    res = acc_mod(pred, target)
    res = [jax.block_until_ready(r) for r in res]
    ref = _reference(pred, target, (1, 5), 0.0)
    for r, rr in zip(res, ref):
        assert abs(float(r) - float(rr)) < 1e-3, (float(r), float(rr))

    # single-int topk path (return_single=True), no threshold
    single = accuracy_pallas(pred, target, topk=1, thresh=None)
    jax.block_until_ready(single)
    ref1 = _reference(pred, target, (1,), None)[0]
    assert abs(float(single) - float(ref1)) < 1e-3, (float(single), float(ref1))

    # bf16 logits stay bf16 on the wire (no wrapper upcast)
    pred_bf16 = pred.astype(jnp.bfloat16)
    res_bf = accuracy_pallas(pred_bf16, target, topk=(1, 5), thresh=None)
    res_bf = [jax.block_until_ready(r) for r in res_bf]
    ref_bf = _reference(pred_bf16.astype(jnp.float32), target, (1, 5), None)
    for r, rr in zip(res_bf, ref_bf):
        assert abs(float(r) - float(rr)) < 1e-3, (float(r), float(rr))

    print("KERNEL_OK")
</pallas_src>

<mosaic_0001>
module attributes {stable_mosaic.version = 11 : i64} {
  func.func @_accuracy_kernel(%arg0: i32, %arg1: memref<16x32xf32, #tpu.memory_space<vmem>>, %arg2: memref<16x1xi32, #tpu.memory_space<vmem>>, %arg3: memref<1x128xi32, #tpu.memory_space<vmem>>) attributes {dimension_semantics = [#tpu.dimension_semantics<parallel>], iteration_bounds = array<i64: 1>, scalar_prefetch = 0 : i64, scratch_operands = 0 : i64, tpu.core_type = #tpu.core_type<tc>, window_params = [{transform_indices = @transform_0, window_bounds = array<i64: 16, 32>}, {transform_indices = @transform_1, window_bounds = array<i64: 16, 1>}, {transform_indices = @transform_2, window_bounds = array<i64: 1, 128>}]} {
    %c0 = arith.constant 0 : index
    %c0_0 = arith.constant 0 : index
    %0 = vector.load %arg1[%c0, %c0_0] : memref<16x32xf32, #tpu.memory_space<vmem>>, vector<16x32xf32>
    %c0_1 = arith.constant 0 : index
    %c0_2 = arith.constant 0 : index
    %1 = vector.load %arg2[%c0_1, %c0_2] : memref<16x1xi32, #tpu.memory_space<vmem>>, vector<16x1xi32>
    %2 = tpu.iota {dimensions = array<i32: 0>} : vector<16x1xi32>
    %c16_i32 = arith.constant 16 : i32
    %3 = arith.muli %arg0, %c16_i32 : i32
    %4 = vector.broadcast %3 : i32 to vector<16x1xi32>
    %5 = arith.addi %4, %2 : vector<16x1xi32>
    %c13_i32 = arith.constant 13 : i32
    %6 = vector.broadcast %c13_i32 : i32 to vector<16x1xi32>
    %7 = arith.cmpi slt, %5, %6 : vector<16x1xi32>
    %8 = tpu.iota {dimensions = array<i32: 1>} : vector<16x32xi32>
    %9 = vector.broadcast %1 : vector<16x1xi32> to vector<16x32xi32>
    %10 = arith.cmpi eq, %8, %9 : vector<16x32xi32>
    %cst = arith.constant 0.000000e+00 : f32
    %11 = vector.broadcast %cst : f32 to vector<16x32xf32>
    %12 = arith.select %10, %0, %11 : vector<16x32xi1>, vector<16x32xf32>
    %cst_3 = arith.constant dense<0.000000e+00> : vector<16xf32>
    %13 = vector.multi_reduction <add>, %12, %cst_3 [1] : vector<16x32xf32> to vector<16xf32>
    %14 = vector.shape_cast %13 : vector<16xf32> to vector<16x1xf32>
    %15 = vector.broadcast %14 : vector<16x1xf32> to vector<16x32xf32>
    %16 = arith.cmpf ogt, %0, %15 : vector<16x32xf32>
    %17 = arith.extui %16 : vector<16x32xi1> to vector<16x32xi32>
    %cst_4 = arith.constant dense<0> : vector<16xi32>
    %18 = vector.multi_reduction <add>, %17, %cst_4 [1] : vector<16x32xi32> to vector<16xi32>
    %19 = vector.shape_cast %18 : vector<16xi32> to vector<16x1xi32>
    %cst_5 = arith.constant 0.000000e+00 : f32
    %20 = vector.broadcast %cst_5 : f32 to vector<16x1xf32>
    %21 = arith.cmpf ogt, %14, %20 : vector<16x1xf32>
    %22 = arith.andi %7, %21 : vector<16x1xi1>
    %23 = tpu.iota {dimensions = array<i32: 1>} : vector<1x128xi32>
    %c0_i32 = arith.constant 0 : i32
    %24 = vector.broadcast %c0_i32 : i32 to vector<1x128xi32>
    %c1_i32 = arith.constant 1 : i32
    %25 = vector.broadcast %c1_i32 : i32 to vector<16x1xi32>
    %26 = arith.cmpi slt, %19, %25 : vector<16x1xi32>
    %27 = arith.andi %22, %26 : vector<16x1xi1>
    %28 = arith.extui %27 : vector<16x1xi1> to vector<16x1xi32>
    %29 = vector.shape_cast %28 : vector<16x1xi32> to vector<1x16x1xi32>
    %cst_6 = arith.constant dense<0> : vector<1xi32>
    %30 = vector.multi_reduction <add>, %29, %cst_6 [1, 2] : vector<1x16x1xi32> to vector<1xi32>
    %31 = vector.shape_cast %30 : vector<1xi32> to vector<1x1x1xi32>
    %32 = vector.extract %31[0, 0, 0] : i32 from vector<1x1x1xi32>
    %c0_i32_7 = arith.constant 0 : i32
    %33 = vector.broadcast %c0_i32_7 : i32 to vector<1x128xi32>
    %34 = arith.cmpi eq, %23, %33 : vector<1x128xi32>
    %c0_i32_8 = arith.constant 0 : i32
    %35 = vector.broadcast %32 : i32 to vector<1x128xi32>
    %36 = vector.broadcast %c0_i32_8 : i32 to vector<1x128xi32>
    %37 = arith.select %34, %35, %36 : vector<1x128xi1>, vector<1x128xi32>
    %38 = arith.addi %24, %37 : vector<1x128xi32>
    %c5_i32 = arith.constant 5 : i32
    %39 = vector.broadcast %c5_i32 : i32 to vector<16x1xi32>
    %40 = arith.cmpi slt, %19, %39 : vector<16x1xi32>
    %41 = arith.andi %22, %40 : vector<16x1xi1>
    %42 = arith.extui %41 : vector<16x1xi1> to vector<16x1xi32>
    %43 = vector.shape_cast %42 : vector<16x1xi32> to vector<1x16x1xi32>
    %cst_9 = arith.constant dense<0> : vector<1xi32>
    %44 = vector.multi_reduction <add>, %43, %cst_9 [1, 2] : vector<1x16x1xi32> to vector<1xi32>
    %45 = vector.shape_cast %44 : vector<1xi32> to vector<1x1x1xi32>
    %46 = vector.extract %45[0, 0, 0] : i32 from vector<1x1x1xi32>
    %c1_i32_10 = arith.constant 1 : i32
    %47 = vector.broadcast %c1_i32_10 : i32 to vector<1x128xi32>
    %48 = arith.cmpi eq, %23, %47 : vector<1x128xi32>
    %c0_i32_11 = arith.constant 0 : i32
    %49 = vector.broadcast %46 : i32 to vector<1x128xi32>
    %50 = vector.broadcast %c0_i32_11 : i32 to vector<1x128xi32>
    %51 = arith.select %48, %49, %50 : vector<1x128xi1>, vector<1x128xi32>
    %52 = arith.addi %38, %51 : vector<1x128xi32>
    %c0_12 = arith.constant 0 : index
    %c0_13 = arith.constant 0 : index
    %53 = vector.load %arg3[%c0_12, %c0_13] : memref<1x128xi32, #tpu.memory_space<vmem>>, vector<1x128xi32>
    tpu.vector_store %arg3[%c0_12, %c0_13], %52 {strides = array<i32>} : memref<1x128xi32, #tpu.memory_space<vmem>>, vector<1x128xi32>,
    return
  }
  func.func @transform_0(%arg0: i32) -> (i32, i32) {
    %c0_i32 = arith.constant 0 : i32
    %c0_i32_0 = arith.constant 0 : i32
    return %arg0, %c0_i32 : i32, i32
  }
  func.func @transform_1(%arg0: i32) -> (i32, i32) {
    %c0_i32 = arith.constant 0 : i32
    %c0_i32_0 = arith.constant 0 : i32
    return %arg0, %c0_i32 : i32, i32
  }
  func.func @transform_2(%arg0: i32) -> (i32, i32) {
    %c0_i32 = arith.constant 0 : i32
    %c0_i32_0 = arith.constant 0 : i32
    return %arg0, %c0_i32 : i32, i32
  }
}

</mosaic_0001>

<llo_original>
// kernel: tpu_custom_call.1
$region0: #{tpu_custom_call.1}
  #allocation0 [shape = 'u32[]', space=smem, size = 0x4, offset = 0x4, fixed_abs, tag = 'smem constant byte address 0x4 - core index']
  #allocation1 [shape = 'u32[144,128]{1,0:T(1,128)}', space=vmem, size = 0x12000, scoped, tag = 'internal scratch']
  %s0 = inlined_call_operand.vmem [shape: f32[13,32], index: 0, kind: input, shape index: {}]
  %s1 = inlined_call_operand.vmem [shape: s32[13,1], index: 1, kind: input, shape index: {}]
  %s2 = inlined_call_operand.hbm [shape: s32[1,128], index: 2, kind: output, shape index: {}]
  %s3 = sld [smem:[#allocation0]]
  $region18: #{tpu_custom_call.1} parent=0
    _
  %s5 = ssub.s32 1, %s3
  %s6 = scalar_select 0, %s5, %s3
  $region1: #{tpu_custom_call.1} parent=0
    #allocation2 [shape = 'u8[512]{0}', space=vmem, size = 0x400, scoped, tag = 'output window, operand 0, single buffered']
    #allocation3 [shape = 's32[1]{0}', space=sflag, size = 0x4, scoped, tag = 'scoped memory for tpu_custom_call.1']
    %7 = vsyncpa [#allocation3], 0
    // Predicated region
    $region2: #{tpu_custom_call.1} parent=1 // pred_check
      _
    $region3: #{tpu_custom_call.1} parent=1 // pred_check_branch
      %9 = sbr.rel (0) target = $region5
    $region4: #{tpu_custom_call.1} parent=1 // pred_region
      _
    $region5: #{tpu_custom_call.1} parent=1 // pred_fallthru
      _
    // Predicated region
    $region6: #{tpu_custom_call.1} parent=1 // pred_check
      _
    $region7: #{tpu_custom_call.1} parent=1 // pred_check_branch
      %11 = sbr.rel (0) target = $region9
    $region8: #{tpu_custom_call.1} parent=1 // pred_region
      _
    $region9: #{tpu_custom_call.1} parent=1 // pred_fallthru
      _
    %v12 = vld [vmem:[%s0] sm:$0xff]
    %v13 = vld [vmem:[%s0 + $0x8] sm:$0xff]
    %v14 = vld [vmem:[%s1] sm:$0xff]
    %v15 = vld [vmem:[%s1 + $0x8] sm:$0xff]
    %v16 = vlaneseq
    %v17 = vshrl.u32 %v16, 7
    %v18 = vadd.s32 %v17, 8
    %s19 = smul.u32 0, 16
    %v20 = vstv %s19
    %v21 = vadd.s32 %v20, %v17
    %v22 = vadd.s32 %v20, %v18
    %vm23 = vcmp.lt.s32.totalorder %v21, 13
    %vm24 = vcmp.lt.s32.totalorder %v22, 13
    %v25 = vlaneseq
    %v26 = vand.u32 %v25, 127
    %27 = vset.pattern.permute.xlu0 0
    %28 = vperm.xlu0 %27, %v14
    %v29 = vpop.permute.xlu0 %28
    %30 = vset.pattern.permute.xlu0 0
    %31 = vperm.xlu0 %30, %v15
    %v32 = vpop.permute.xlu0 %31
    %vm33 = vcmp.eq.s32.totalorder %v26, %v29
    %vm34 = vcmp.eq.s32.totalorder %v26, %v32
    %v35 = vsel %vm33, %v12, 0.0
    %v36 = vsel %vm34, %v13, 0.0
    %vm37 = vcmask 261120
    %v38 = vsel %vm37, %v35, 0.0
    %39 = vadd.xlane.f32.xlu0 %v38
    %v40 = vpop.xlane.xlu0 %39
    %v41 = vsel %vm37, %v36, 0.0
    %42 = vadd.xlane.f32.xlu0 %v41
    %v43 = vpop.xlane.xlu0 %42
    %vm44 = vcmp.gt.f32.partialorder %v12, %v40
    %vm45 = vcmp.gt.f32.partialorder %v13, %v43
    %v46 = vsel %vm44, 1, 0
    %v47 = vsel %vm45, 1, 0
    %v48 = vsel %vm37, %v46, 0
    %v49 = vand.u32 %v48, 65535
    %v50 = vshrl.u32 %v48, 16
    %v51 = vcvt.s32.f32 %v49
    %v52 = vcvt.s32.f32 %v50
    %53 = vadd.xlane.f32.xlu0 %v51
    %v54 = vpop.xlane.xlu0 %53
    %55 = vadd.xlane.f32.xlu0 %v52
    %v56 = vpop.xlane.xlu0 %55
    %v57 = vcvt.f32.s32 %v54
    %v58 = vcvt.f32.s32 %v56
    %v59 = vshll.u32 %v58, 16
    %v60 = vadd.s32 %v59, %v57
    %v61 = vsel %vm37, %v47, 0
    %v62 = vand.u32 %v61, 65535
    %v63 = vshrl.u32 %v61, 16
    %v64 = vcvt.s32.f32 %v62
    %v65 = vcvt.s32.f32 %v63
    %66 = vadd.xlane.f32.xlu0 %v64
    %v67 = vpop.xlane.xlu0 %66
    %68 = vadd.xlane.f32.xlu0 %v65
    %v69 = vpop.xlane.xlu0 %68
    %v70 = vcvt.f32.s32 %v67
    %v71 = vcvt.f32.s32 %v69
    %v72 = vshll.u32 %v71, 16
    %v73 = vadd.s32 %v72, %v70
    %vm74 = vcmp.gt.f32.partialorder %v40, 0.0
    %vm75 = vcmp.gt.f32.partialorder %v43, 0.0
    %vm76 = vmand %vm23, %vm74
    %vm77 = vmand %vm24, %vm75
    %vm78 = vcmp.lt.s32.totalorder %v60, 1
    %vm79 = vcmp.lt.s32.totalorder %v73, 1
    %vm80 = vmand %vm76, %vm78
    %vm81 = vmand %vm77, %vm79
    %v82 = vsel %vm80, 1, 0
    %v83 = vsel %vm81, 1, 0
    %v84 = vadd.s32 %v82, %v83
    %v85 = vrot.slane %v84, 4
    %v86 = vadd.s32 %v84, %v85
    %v87 = vrot.slane %v86, 2
    %v88 = vadd.s32 %v86, %v87
    %v89 = vrot.slane %v88, 1
    %v90 = vadd.s32 %v88, %v89
    %s91 = vtos %v90
    %vm92 = vcmp.eq.s32.totalorder %v26, 0
    %v93 = vstv %s91
    %v94 = vsel %vm92, %v93, 0
    %vm95 = vcmp.lt.s32.totalorder %v60, 5
    %vm96 = vcmp.lt.s32.totalorder %v73, 5
    %vm97 = vmand %vm76, %vm95
    %vm98 = vmand %vm77, %vm96
    %v99 = vsel %vm97, 1, 0
    %v100 = vsel %vm98, 1, 0
    %v101 = vadd.s32 %v99, %v100
    %v102 = vrot.slane %v101, 4
    %v103 = vadd.s32 %v101, %v102
    %v104 = vrot.slane %v103, 2
    %v105 = vadd.s32 %v103, %v104
    %v106 = vrot.slane %v105, 1
    %v107 = vadd.s32 %v105, %v106
    %s108 = vtos %v107
    %vm109 = vcmp.eq.s32.totalorder %v26, 1
    %v110 = vstv %s108
    %v111 = vsel %vm109, %v110, 0
    %v112 = vadd.s32 %v94, %v111
    %113 = vst [vmem:[#allocation2] sm:$0x1] %v112
    // Predicated region
    $region10: #{tpu_custom_call.1} parent=1 // pred_check
      _
    $region11: #{tpu_custom_call.1} parent=1 // pred_check_branch
      %115 = sbr.rel (0) target = $region13
    $region12: #{tpu_custom_call.1} parent=1 // pred_region
      %s117 = ssub.s32 16, 16
      %118 = vsyncadd [#allocation3], %s117
      %s120 = sshll.u32 [#allocation2], 4
      %s121 = int_to_ptr.vmem [resolvable:$true] %s120
      %123 = dma.vmem_to_hbm [thread:$0]  %s121, 16, %s2, [#allocation3]
    $region13: #{tpu_custom_call.1} parent=1 // pred_fallthru
      _
    // Predicated region
    $region14: #{tpu_custom_call.1} parent=1 // pred_check
      _
    $region15: #{tpu_custom_call.1} parent=1 // pred_check_branch
      %125 = sbr.rel (0) target = $region17
    $region16: #{tpu_custom_call.1} parent=1 // pred_region
      %126 = dma.done [#allocation3], 16
    $region17: #{tpu_custom_call.1} parent=1 // pred_fallthru
      _
    %127 = vsyncpa [#allocation3], 1

</llo_original>
